<compile_context>
chip_gen: v5e
topology: v5e:2x2
jax: 0.10.0
libtpu: 0.0.40
codegen_flags: <defaults>
</compile_context>

<pallas_src>
import functools
import math
import collections

import jax
import jax.numpy as jnp
from jax.experimental import pallas as pl
from jax.experimental.pallas import tpu as pltpu


# ----------------------------------------------------------------------------
# Generation-aware tuning parameters
# ----------------------------------------------------------------------------
_GEN_PARAMS = {
    #        tm (f32) tm(<=2B)  tn cap  tk cap  single-M-block  N/K align  vmem limit
    "v5e": dict(tm32=256, tm16=512,  tn_cap=1024, tk_cap=2048, m_single=1024, align=128, vmem=72 << 20),
    "v6e": dict(tm32=512, tm16=1024, tn_cap=1024, tk_cap=2048, m_single=1024, align=256, vmem=72 << 20),
    "v7x": dict(tm32=384, tm16=512,  tn_cap=1024, tk_cap=2048, m_single=768,  align=256, vmem=48 << 20),
    "unknown": dict(tm32=384, tm16=512, tn_cap=1024, tk_cap=2048, m_single=768, align=256, vmem=48 << 20),
}


@functools.lru_cache(maxsize=None)
def _tpu_generation():
    try:
        kind = jax.devices()[0].device_kind.lower()
    except Exception:
        return "unknown"
    if "v5 lite" in kind or "v5lite" in kind or "v5e" in kind:
        return "v5e"
    if "v6" in kind:
        return "v6e"
    if "v7" in kind:
        return "v7x"
    if "v5" in kind:      # v5p etc. -> conservative 128-alignment, large VMEM
        return "v5e"
    return "unknown"


def _gen_params():
    return _GEN_PARAMS.get(_tpu_generation(), _GEN_PARAMS["unknown"])


def _round_up(x, m):
    return ((x + m - 1) // m) * m


def _choose_nk_tile(dim, cap, align):
    """Tile for a lane-oriented (N or K) axis.

    Valid tiles: either the full dim (full-dim blocks are exempt from the
    (8,128) rule) or a multiple of 128 that divides the (possibly padded) dim.
    Preference: `align` multiples (256 on v6e/v7x for the 2x256x256 MXU).
    Returns (tile, padded_dim)."""
    if dim <= cap:
        return dim, dim                    # single full block, no padding

    def best_divisor(padded, step):
        best, t = 0, step
        while t <= cap:
            if padded % t == 0:
                best = t
            t += step
        return best

    if dim % align == 0:
        return best_divisor(dim, align), dim
    if dim % 128 == 0:
        t = best_divisor(dim, 128)
        if t:
            return t, dim                  # avoid padding; 128-aligned tile
    padded = _round_up(dim, align)
    return best_divisor(padded, align), padded


def _choose_m_tile(m, gp, itemsize):
    """Tile for the (sublane-oriented) M axis. Returns (tm, m_padded)."""
    sub = 8 if itemsize >= 4 else (16 if itemsize == 2 else 32)
    if m <= gp["m_single"]:
        return m, m                        # single M block: weight streams once
    tm = gp["tm16"] if itemsize < 4 else gp["tm32"]
    tm = max(_round_up(tm, sub), sub)
    return tm, _round_up(m, tm)


# ----------------------------------------------------------------------------
# Kernels
# ----------------------------------------------------------------------------
def _linear_tiled_kernel(x_ref, wt_ref, b_ref, o_ref, acc_ref):
    # x: (tm, tk), wt: (tk, tn) pre-transposed, b: (1, tn), o: (tm, tn), acc f32
    k = pl.program_id(2)

    @pl.when(k == 0)
    def _():
        acc_ref[...] = jnp.zeros_like(acc_ref)

    acc_ref[...] += jnp.dot(x_ref[...], wt_ref[...],
                            preferred_element_type=jnp.float32)

    @pl.when(k == pl.num_programs(2) - 1)
    def _():
        o_ref[...] = (acc_ref[...] + b_ref[...].astype(jnp.float32)).astype(o_ref.dtype)


def _linear_single_block_kernel(x_ref, wt_ref, b_ref, o_ref):
    # Whole problem in one VMEM block: no grid, no accumulator scratch.
    o_ref[...] = (jnp.dot(x_ref[...], wt_ref[...],
                          preferred_element_type=jnp.float32)
                  + b_ref[...].astype(jnp.float32)).astype(o_ref.dtype)


# ----------------------------------------------------------------------------
# Param preparation (do ONCE per layer, cache the result)
# ----------------------------------------------------------------------------
LinearNormParams = collections.namedtuple(
    "LinearNormParams",
    ["w_t", "b", "in_dim", "out_dim", "tn", "tk", "n_pad", "k_pad"])


def prepare_linear_norm_params(weight, bias=None, *, compute_dtype=None):
    """One-time prep of nn.Linear params for the Pallas kernel.

    - transposes W to (in_dim, out_dim) so the kernel runs a plain A@B matmul,
    - pads K/N once (only when a dim is both unaligned and too large for a
      single block) -> no per-call HBM pad copies,
    - optionally casts to compute_dtype (e.g. jnp.bfloat16) for MXU peak rate.
    """
    out_dim, in_dim = weight.shape
    gp = _gen_params()

    if bias is None:
        bias = jnp.zeros((out_dim,), dtype=weight.dtype)

    w_t = jnp.asarray(weight).T            # one-time HBM transpose
    b = jnp.asarray(bias)
    if compute_dtype is not None:
        w_t = w_t.astype(compute_dtype)
        b = b.astype(compute_dtype)

    tk, k_pad = _choose_nk_tile(in_dim, gp["tk_cap"], gp["align"])
    tn, n_pad = _choose_nk_tile(out_dim, gp["tn_cap"], gp["align"])

    if k_pad != in_dim or n_pad != out_dim:
        w_t = jnp.pad(w_t, ((0, k_pad - in_dim), (0, n_pad - out_dim)))
    if n_pad != out_dim:
        b = jnp.pad(b, (0, n_pad - out_dim))

    return LinearNormParams(w_t, b.reshape(1, n_pad), in_dim, out_dim,
                            tn, tk, n_pad, k_pad)


# ----------------------------------------------------------------------------
# Forward
# ----------------------------------------------------------------------------
def linear_norm_apply(x, params, *, compute_dtype=None):
    """y = x @ W^T + b using pre-prepared params (see prepare_linear_norm_params)."""
    lead = x.shape[:-1]
    in_dim = x.shape[-1]
    assert in_dim == params.in_dim, "input feature dim mismatch"
    out_dtype = x.dtype
    out_dim = params.out_dim
    tn, tk, n_pad, k_pad = params.tn, params.tk, params.n_pad, params.k_pad

    m = int(math.prod(lead)) if lead else 1
    x2 = x.reshape(m, in_dim)
    if compute_dtype is not None:
        x2 = x2.astype(compute_dtype)

    gp = _gen_params()
    itemsize = jnp.dtype(x2.dtype).itemsize
    tm, m_pad = _choose_m_tile(m, gp, itemsize)

    # ---- single-block fast path: tiny layer, no padding, no grid ------------
    if tm == m and tk == in_dim and tn == n_pad == out_dim:
        need = (x2.size * x2.dtype.itemsize
                + params.w_t.size * params.w_t.dtype.itemsize
                + params.b.size * params.b.dtype.itemsize
                + m * out_dim * jnp.dtype(out_dtype).itemsize)
        if need <= (8 << 20):
            out = pl.pallas_call(
                _linear_single_block_kernel,
                out_shape=jax.ShapeDtypeStruct((m, out_dim), out_dtype),
            )(x2, params.w_t, params.b)
            return out.reshape(*lead, out_dim)

    # ---- tiled 3-D grid path -------------------------------------------------
    if k_pad != in_dim:
        x2 = jnp.pad(x2, ((0, 0), (0, k_pad - in_dim)))
    if m_pad != m:
        x2 = jnp.pad(x2, ((0, m_pad - m), (0, 0)))

    grid = (m_pad // tm, n_pad // tn, k_pad // tk)

    w_bytes = params.w_t.dtype.itemsize
    b_bytes = params.b.dtype.itemsize
    out_bytes = jnp.dtype(out_dtype).itemsize
    flops = 2 * m_pad * n_pad * k_pad
    # Operand re-streaming: X is re-read per N tile, W (and bias) per M tile.
    bytes_accessed = int(
        grid[1] * m_pad * k_pad * itemsize
        + grid[0] * k_pad * n_pad * w_bytes
        + grid[0] * n_pad * b_bytes
        + m_pad * n_pad * out_bytes)

    vmem_need = (2 * tm * tk * itemsize          # x, double-buffered
                 + 2 * tk * tn * w_bytes         # W^T, double-buffered
                 + 2 * tm * tn * out_bytes       # output, double-buffered
                 + tm * tn * 4                   # f32 accumulator
                 + 2 * tn * b_bytes)             # bias
    vmem_limit = int(min(max(int(vmem_need * 1.5) + (4 << 20), 32 << 20),
                         gp["vmem"]))

    # NOTE: for small-M, weight-DMA-bound shapes, sweeping
    # pipeline_mode=pl.Buffered(3) on the weight BlockSpec is worth trying.
    out = pl.pallas_call(
        _linear_tiled_kernel,
        out_shape=jax.ShapeDtypeStruct((m_pad, n_pad), out_dtype),
        grid_spec=pltpu.PrefetchScalarGridSpec(
            num_scalar_prefetch=0,
            grid=grid,
            in_specs=[
                pl.BlockSpec((tm, tk), lambda i, j, k: (i, k)),   # x
                pl.BlockSpec((tk, tn), lambda i, j, k: (k, j)),   # W^T (in, out)
                pl.BlockSpec((1, tn), lambda i, j, k: (0, j)),    # bias
            ],
            out_specs=pl.BlockSpec((tm, tn), lambda i, j, k: (i, j)),
            scratch_shapes=[pltpu.VMEM((tm, tn), jnp.float32)],
        ),
        compiler_params=pltpu.CompilerParams(
            dimension_semantics=("parallel", "parallel", "arbitrary"),
            vmem_limit_bytes=vmem_limit),
        cost_estimate=pl.CostEstimate(
            flops=flops, bytes_accessed=bytes_accessed, transcendentals=0),
    )(x2, params.w_t, params.b)

    return out[:m, :out_dim].reshape(*lead, out_dim)


def linear_norm(x, weight, bias=None, *, compute_dtype=None):
    """Convenience wrapper matching torch.nn.Linear(x).

    For repeated forward calls, prepare the params once with
    prepare_linear_norm_params and use linear_norm_apply (avoids the per-call
    transpose / pad of the weight)."""
    params = prepare_linear_norm_params(weight, bias, compute_dtype=compute_dtype)
    return linear_norm_apply(x, params, compute_dtype=compute_dtype)


# ----------------------------------------------------------------------------
# Init matching the PyTorch module (xavier_uniform, gain('linear') == 1.0)
# ----------------------------------------------------------------------------
def init_linear_norm_params(key, in_dim, out_dim, w_init_gain="linear",
                            dtype=jnp.float32):
    gain = 1.0  # torch.nn.init.calculate_gain('linear')
    bound = gain * math.sqrt(6.0 / (in_dim + out_dim))
    wkey, _ = jax.random.split(key)
    weight = jax.random.uniform(wkey, (out_dim, in_dim), dtype=dtype,
                                minval=-bound, maxval=bound)
    # nn.Linear default bias init: U(-1/sqrt(in_dim), 1/sqrt(in_dim))
    bbound = 1.0 / math.sqrt(in_dim)
    bias = jax.random.uniform(jax.random.fold_in(key, 1), (out_dim,),
                              dtype=dtype, minval=-bbound, maxval=bbound)
    return weight, bias


if __name__ == "__main__":
    key = jax.random.PRNGKey(0)
    k_x, k_p = jax.random.split(key)

    # 1) Small shapes consistent with the module's forward: (batch, seq, in_dim).
    batch, seq, in_dim, out_dim = 2, 8, 32, 64
    x = jax.random.normal(k_x, (batch, seq, in_dim), dtype=jnp.float32)
    weight, bias = init_linear_norm_params(k_p, in_dim, out_dim)

    params = prepare_linear_norm_params(weight, bias)   # one-time, cacheable
    y = linear_norm_apply(x, params)
    jax.block_until_ready(y)
    ref = x @ weight.T + bias
    assert y.shape == (batch, seq, out_dim)
    assert jnp.allclose(y, ref, atol=1e-5, rtol=1e-5)

    # 2) Unaligned medium layer: single full-dim blocks, no padding anywhere.
    m2, k2, n2 = 384, 512, 640
    x2 = jax.random.normal(jax.random.fold_in(key, 2), (m2, k2), jnp.float32)
    w2, b2 = init_linear_norm_params(jax.random.fold_in(key, 3), k2, n2)
    y2 = linear_norm(x2, w2, b2)
    jax.block_until_ready(y2)
    assert jnp.allclose(y2, x2 @ w2.T + b2, atol=1e-4, rtol=1e-4)

    # 3) Large M / K: exercises the 3-D grid (M tiling + K accumulation).
    m3, k3, n3 = 2048, 4096, 256
    x3 = jax.random.normal(jax.random.fold_in(key, 4), (m3, k3), jnp.float32)
    w3, b3 = init_linear_norm_params(jax.random.fold_in(key, 5), k3, n3)
    p3 = prepare_linear_norm_params(w3, b3)
    y3 = linear_norm_apply(x3, p3)
    jax.block_until_ready(y3)
    ref3 = x3 @ w3.T + b3
    assert y3.shape == (m3, n3)
    assert jnp.allclose(y3, ref3, atol=5e-3, rtol=1e-3)

    # 4) bf16 operand / f32 accumulation path (MXU peak rate), f32 output.
    y2b = linear_norm(x2, w2, b2, compute_dtype=jnp.bfloat16)
    jax.block_until_ready(y2b)
    assert jnp.allclose(y2b, x2 @ w2.T + b2, atol=5e-2, rtol=5e-2)

    print("KERNEL_OK")
</pallas_src>

<mosaic_0001>
module attributes {stable_mosaic.version = 11 : i64} {
  func.func @_linear_single_block_kernel(%arg0: memref<16x32xf32, #tpu.memory_space<vmem>>, %arg1: memref<32x64xf32, #tpu.memory_space<vmem>>, %arg2: memref<1x64xf32, #tpu.memory_space<vmem>>, %arg3: memref<16x64xf32, #tpu.memory_space<vmem>>) attributes {dimension_semantics = [], scalar_prefetch = 0 : i64, scratch_operands = 0 : i64, tpu.core_type = #tpu.core_type<tc>} {
    %c0 = arith.constant 0 : index
    %c0_0 = arith.constant 0 : index
    %0 = vector.load %arg0[%c0, %c0_0] : memref<16x32xf32, #tpu.memory_space<vmem>>, vector<16x32xf32>
    %c0_1 = arith.constant 0 : index
    %c0_2 = arith.constant 0 : index
    %1 = vector.load %arg1[%c0_1, %c0_2] : memref<32x64xf32, #tpu.memory_space<vmem>>, vector<32x64xf32>
    %cst = arith.constant dense<0.000000e+00> : vector<16x64xf32>
    %2 = tpu.matmul %0, %1, %cst {dimension_numbers = #tpu.dot_dimension_numbers<[1], [0], [0], [1], [0, 0, 1, 1], [], []>} : vector<16x32xf32>, vector<32x64xf32>, vector<16x64xf32> -> vector<16x64xf32>
    %c0_3 = arith.constant 0 : index
    %c0_4 = arith.constant 0 : index
    %3 = vector.load %arg2[%c0_3, %c0_4] : memref<1x64xf32, #tpu.memory_space<vmem>>, vector<1x64xf32>
    %4 = vector.broadcast %3 : vector<1x64xf32> to vector<16x64xf32>
    %5 = arith.addf %2, %4 : vector<16x64xf32>
    %c0_5 = arith.constant 0 : index
    %c0_6 = arith.constant 0 : index
    %6 = vector.load %arg3[%c0_5, %c0_6] : memref<16x64xf32, #tpu.memory_space<vmem>>, vector<16x64xf32>
    tpu.vector_store %arg3[%c0_5, %c0_6], %5 {strides = array<i32>} : memref<16x64xf32, #tpu.memory_space<vmem>>, vector<16x64xf32>,
    return
  }
}

</mosaic_0001>

<llo_original>
// kernel: tpu_custom_call.1
$region0: #{tpu_custom_call.1}
  #allocation0 [shape = 'u32[]', space=smem, size = 0x4, offset = 0x4, fixed_abs, tag = 'smem constant byte address 0x4 - core index']
  #allocation1 [shape = 'u32[72,128]{1,0:T(1,128)}', space=vmem, size = 0x9000, scoped, tag = 'internal scratch']
  %s0 = inlined_call_operand.hbm [shape: f32[16,32], index: 0, kind: input, shape index: {}]
  %s1 = inlined_call_operand.hbm [shape: f32[32,64], index: 1, kind: input, shape index: {}]
  %s2 = inlined_call_operand.vmem [shape: f32[1,64], index: 2, kind: input, shape index: {}]
  %s3 = inlined_call_operand.hbm [shape: f32[16,64], index: 3, kind: output, shape index: {}]
  %s4 = sld [smem:[#allocation0]]
  $region30: #{tpu_custom_call.1} parent=0
    _
  %s6 = ssub.s32 1, %s4
  %s7 = scalar_select 0, %s6, %s4
  $region1: #{tpu_custom_call.1} parent=0
    #allocation2 [shape = 'u8[8192]{0}', space=vmem, size = 0x2000, scoped, tag = 'input window, operand 0, single buffered']
    #allocation3 [shape = 's32[1]{0}', space=sflag, size = 0x4, scoped, tag = 'scoped memory for tpu_custom_call.1']
    #allocation4 [shape = 's32[1]{0}', space=sflag, size = 0x4, scoped, tag = 'scoped memory for tpu_custom_call.1']
    #allocation5 [shape = 'u8[16384]{0}', space=vmem, size = 0x4000, scoped, tag = 'input window, operand 1, single buffered']
    #allocation6 [shape = 's32[1]{0}', space=sflag, size = 0x4, scoped, tag = 'scoped memory for tpu_custom_call.1']
    #allocation7 [shape = 'u8[8192]{0}', space=vmem, size = 0x2000, scoped, tag = 'output window, operand 0, single buffered']
    %8 = vsyncpa [#allocation3], 0
    %9 = vsyncpa [#allocation6], 0
    %10 = vsyncpa [#allocation4], 0
    // Predicated region
    $region2: #{tpu_custom_call.1} parent=1 // pred_check
      _
    $region3: #{tpu_custom_call.1} parent=1 // pred_check_branch
      %12 = sbr.rel (0) target = $region5
    $region4: #{tpu_custom_call.1} parent=1 // pred_region
      %14 = vsyncadd [#allocation3], 0
      %s15 = sshll.u32 %s0, 4
      %s16 = int_to_ptr.hbm [resolvable:$true] %s15
      %s17 = sshll.u32 [#allocation2], 4
      %s18 = int_to_ptr.vmem [resolvable:$true] %s17
      %23 = dma.hbm_to_vmem [thread:$0]  %s16, 256, %s18, [#allocation3], 128, 128, 8
    $region5: #{tpu_custom_call.1} parent=1 // pred_fallthru
      _
    // Predicated region
    $region6: #{tpu_custom_call.1} parent=1 // pred_check
      _
    $region7: #{tpu_custom_call.1} parent=1 // pred_check_branch
      %25 = sbr.rel (0) target = $region9
    $region8: #{tpu_custom_call.1} parent=1 // pred_region
      %27 = vsyncadd [#allocation6], 0
      %s28 = sshll.u32 %s1, 4
      %s29 = int_to_ptr.hbm [resolvable:$true] %s28
      %s30 = sshll.u32 [#allocation5], 4
      %s31 = int_to_ptr.vmem [resolvable:$true] %s30
      %36 = dma.hbm_to_vmem [thread:$0]  %s29, 512, %s31, [#allocation6], 128, 128, 8
    $region9: #{tpu_custom_call.1} parent=1 // pred_fallthru
      _
    // Predicated region
    $region10: #{tpu_custom_call.1} parent=1 // pred_check
      _
    $region11: #{tpu_custom_call.1} parent=1 // pred_check_branch
      %38 = sbr.rel (0) target = $region13
    $region12: #{tpu_custom_call.1} parent=1 // pred_region
      _
    $region13: #{tpu_custom_call.1} parent=1 // pred_fallthru
      _
    // Predicated region
    $region14: #{tpu_custom_call.1} parent=1 // pred_check
      _
    $region15: #{tpu_custom_call.1} parent=1 // pred_check_branch
      %40 = sbr.rel (0) target = $region17
    $region16: #{tpu_custom_call.1} parent=1 // pred_region
      %42 = dma.done [#allocation3], 256
    $region17: #{tpu_custom_call.1} parent=1 // pred_fallthru
      _
    // Predicated region
    $region18: #{tpu_custom_call.1} parent=1 // pred_check
      _
    $region19: #{tpu_custom_call.1} parent=1 // pred_check_branch
      %44 = sbr.rel (0) target = $region21
    $region20: #{tpu_custom_call.1} parent=1 // pred_region
      %46 = dma.done [#allocation6], 512
    $region21: #{tpu_custom_call.1} parent=1 // pred_fallthru
      _
    %v47 = vld [vmem:[#allocation2] sm:$0xff]
    %v48 = vld [vmem:[#allocation2 + $0x8] sm:$0xff]
    %v49 = vld [vmem:[#allocation5] sm:$0xff]
    %v50 = vld [vmem:[#allocation5 + $0x8] sm:$0xff]
    %v51 = vld [vmem:[#allocation5 + $0x10] sm:$0xff]
    %v52 = vld [vmem:[#allocation5 + $0x18] sm:$0xff]
    %v53 = vld [vmem:[%s2] sm:$0x1]
    %v55 = vperm.slane %v53, 0
    %vm57 = vcmask 261120
    %v59 = vsel %vm57, %v47, 0
    %v62 = vsel %vm57, %v48, 0
    %64 = vmatpush.msra.mxu0 0.0
    %65 = vmatpush.msra.mxu0 0.0
    %66 = vmatpush.msra.mxu0 0.0
    %67 = vmatpush.msra.mxu0 0.0
    %68 = vmatpush.msra.mxu0 0.0
    %69 = vmatpush.msra.mxu0 0.0
    %70 = vmatpush.msra.mxu0 0.0
    %71 = vmatpush.msra.mxu0 0.0
    %72 = vmatpush.msra.mxu0 0.0
    %73 = vmatpush.msra.mxu0 0.0
    %74 = vmatpush.msra.mxu0 0.0
    %75 = vmatpush.msra.mxu0 0.0
    %76 = vmatpush.msra.mxu0 %v52
    %77 = vmatpush.msra.mxu0 %v51
    %78 = vmatpush.msra.mxu0 %v50
    %79 = vmatpush.msra.mxu0 %v49
    %80 = vmatmul.f32.gmra.mxu0 %v59
    %v81 = vpop.f32.mrf.mxu0
    %v82 = vadd.f32 %v55, %v81
    %83 = vmatmul.f32.gmra.mxu0 %v62
    %v84 = vpop.f32.mrf.mxu0
    %v85 = vadd.f32 %v55, %v84
    %86 = vdwg.mxu0
    %vm87 = vcmask 523264
    %88 = vst.msk [vmem:[#allocation7] sm:$0xff] %vm87, %v82
    %89 = vst.msk [vmem:[#allocation7 + $0x8] sm:$0xff] %vm87, %v85
    // Predicated region
    $region22: #{tpu_custom_call.1} parent=1 // pred_check
      _
    $region23: #{tpu_custom_call.1} parent=1 // pred_check_branch
      %91 = sbr.rel (0) target = $region25
    $region24: #{tpu_custom_call.1} parent=1 // pred_region
      %93 = vsyncadd [#allocation4], 0
      %s94 = sshll.u32 [#allocation7], 4
      %s95 = int_to_ptr.vmem [resolvable:$true] %s94
      %s96 = sshll.u32 %s3, 4
      %s97 = int_to_ptr.hbm [resolvable:$true] %s96
      %102 = dma.vmem_to_hbm [thread:$0]  %s95, 256, %s97, [#allocation4], 128, 128, 8
    $region25: #{tpu_custom_call.1} parent=1 // pred_fallthru
      _
    // Predicated region
    $region26: #{tpu_custom_call.1} parent=1 // pred_check
      _
    $region27: #{tpu_custom_call.1} parent=1 // pred_check_branch
      %104 = sbr.rel (0) target = $region29
    $region28: #{tpu_custom_call.1} parent=1 // pred_region
      %106 = dma.done [#allocation4], 256
    $region29: #{tpu_custom_call.1} parent=1 // pred_fallthru
      _
    %107 = vsyncpa [#allocation3], 1
    %108 = vsyncpa [#allocation6], 1
    %109 = vsyncpa [#allocation4], 1

</llo_original>
